<compile_context>
chip_gen: v7x
topology: tpu7x:2x2x1
jax: 0.10.0
libtpu: 0.0.40
codegen_flags: <defaults>
</compile_context>

<pallas_src>
import functools
import math

import jax
import jax.numpy as jnp
from jax import lax
from jax.experimental import pallas as pl
from jax.experimental.pallas import tpu as pltpu

LN_EPS = 1e-5   # torch.nn.LayerNorm default
LANE = 128
SUBLANE = 8


def _cdiv(a, b):
    return -(-a // b)


def _round_up(x, m):
    return _cdiv(x, m) * m


# ---------------------------------------------------------------------------
# Kernels
# ---------------------------------------------------------------------------

def _epilogue(y, gamma, beta, n_valid):
    """tanh + LayerNorm over the first n_valid feature columns (all f32).

    Padded feature columns of y are exactly zero (zero-padded W columns / bias,
    tanh(0)==0), so plain sums divided by n_valid give exact statistics; zero-padded
    gamma/beta zero the padded output columns.
    """
    y = jnp.tanh(y)
    inv_n = jnp.float32(1.0 / n_valid)
    mean = jnp.sum(y, axis=-1, keepdims=True) * inv_n
    # One-pass variance E[y^2]-mean^2; safe: tanh output bounded in (-1,1), eps guards.
    var = jnp.sum(y * y, axis=-1, keepdims=True) * inv_n - mean * mean
    norm = (y - mean) * lax.rsqrt(var + LN_EPS)
    return norm * gamma + beta


def dnn_kernel_fused(x_ref, w_ref, b_ref, g_ref, be_ref, o_ref, *, n_valid):
    # Dropout is identity in eval mode.
    # TODO(synk): training-mode dropout (p=0.5) would need pltpu.prng_random_bits + mask/scale.
    y = jnp.dot(x_ref[...], w_ref[...], preferred_element_type=jnp.float32)
    y = y + b_ref[...]
    o_ref[...] = _epilogue(y, g_ref[...], be_ref[...], n_valid).astype(o_ref.dtype)


def dnn_kernel_ktiled(x_ref, w_ref, b_ref, g_ref, be_ref, o_ref, acc_ref, *, n_valid):
    k = pl.program_id(1)

    @pl.when(k == 0)
    def _():
        acc_ref[...] = jnp.zeros_like(acc_ref)

    acc_ref[...] += jnp.dot(x_ref[...], w_ref[...], preferred_element_type=jnp.float32)

    @pl.when(k == pl.num_programs(1) - 1)
    def _():
        y = acc_ref[...] + b_ref[...]
        o_ref[...] = _epilogue(y, g_ref[...], be_ref[...], n_valid).astype(o_ref.dtype)


# ---------------------------------------------------------------------------
# Tile / VMEM planning
# ---------------------------------------------------------------------------

def _vmem_policy():
    """Generation-aware (budget, vmem_limit_bytes).

    ~100 MiB limit on v5e/v6e (128 MiB physical), ~48 MiB on v7x (64 MiB physical).
    Falls back to a v7x-safe value if the hardware query is unavailable.
    """
    try:
        cap = int(pltpu.get_tpu_info().vmem_capacity_bytes)
        if cap <= 0:
            raise ValueError("bad vmem capacity")
    except Exception:
        cap = 64 << 20
    limit = max(24 << 20, min(cap - (16 << 20), int(cap * 0.78)))
    budget = limit - (6 << 20)   # headroom for Mosaic internal scratch / semaphores
    return budget, limit


def _align_tm(tm, rows):
    """MXU-friendly row tile: full rows if one tile suffices, else multiple of 256
    (v6e/v7x 2x256 MXU) when large, 128 (v5e 4x128 MXU) when medium, sublane (8) else."""
    if tm >= rows:
        return rows                    # block dim == full array dim is always legal
    if tm >= 256:
        return (tm // 256) * 256
    if tm >= 128:
        return 128
    return max(SUBLANE, (tm // SUBLANE) * SUBLANE)


def _choose_tm(rows, per_row_bytes, fixed_bytes, budget):
    avail = budget - fixed_bytes
    if avail < per_row_bytes * SUBLANE:
        return None
    tm = avail // per_row_bytes
    # Keep >= ~8 grid steps when rows are large (v7x megacore + pipelining need several
    # steps); tiles beyond 1024 rows buy nothing (per-step overhead ~0.35 us).
    tm = min(int(tm), 1024, max(256, _round_up(_cdiv(rows, 8), 256)))
    return _align_tm(tm, rows)


# ---------------------------------------------------------------------------
# pallas_call builders
# ---------------------------------------------------------------------------

def _dnn_pallas(x2, w, b2, g2, be2, out_dtype, n_valid, single_buffer_params,
                budget, limit):
    rows, in_f = x2.shape
    out_pad = w.shape[1]
    xb = jnp.dtype(x2.dtype).itemsize
    wb = jnp.dtype(w.dtype).itemsize
    ob = jnp.dtype(out_dtype).itemsize
    pbuf = 1 if single_buffer_params else 2

    def param_spec(shape, index_map):
        # Constant-index params: single buffer (no point double-buffering a block whose
        # index never changes); halves the dominant resident-VMEM consumer.
        if single_buffer_params:
            return pl.BlockSpec(shape, index_map, pipeline_mode=pl.Buffered(1))
        return pl.BlockSpec(shape, index_map)

    compiler_params_1d = pltpu.CompilerParams(
        dimension_semantics=("parallel",), vmem_limit_bytes=limit)

    # ---------------- Fused path: whole K (in_features) resident -----------------
    fixed = pbuf * (in_f * out_pad * wb + 3 * out_pad * 4)
    per_row = 2 * in_f * xb + 2 * out_pad * ob + 3 * out_pad * 4   # x/out tiles + f32 temps
    tm = _choose_tm(rows, per_row, fixed, budget)

    if tm is not None:
        grid = (_cdiv(rows, tm),)
        cost = pl.CostEstimate(
            flops=2 * rows * in_f * out_pad + 10 * rows * out_pad,
            transcendentals=rows * out_pad,
            bytes_accessed=(rows * in_f * xb + in_f * out_pad * wb
                            + 3 * out_pad * 4 + rows * out_pad * ob),
        )
        return pl.pallas_call(
            functools.partial(dnn_kernel_fused, n_valid=n_valid),
            out_shape=jax.ShapeDtypeStruct((rows, out_pad), out_dtype),
            grid_spec=pltpu.PrefetchScalarGridSpec(
                num_scalar_prefetch=0,
                grid=grid,
                in_specs=[
                    pl.BlockSpec((tm, in_f), lambda i: (i, 0)),       # x row tile
                    param_spec((in_f, out_pad), lambda i: (0, 0)),    # W resident
                    param_spec((1, out_pad), lambda i: (0, 0)),       # b
                    param_spec((1, out_pad), lambda i: (0, 0)),       # gamma
                    param_spec((1, out_pad), lambda i: (0, 0)),       # beta
                ],
                out_specs=pl.BlockSpec((tm, out_pad), lambda i: (i, 0)),
            ),
            compiler_params=compiler_params_1d,
            cost_estimate=cost,
        )(x2, w, b2, g2, be2)

    # ---------------- K-tiled fallback: W too large to keep resident -------------
    tm = tk = None
    for cand_tk in (512, 256, 128):
        fixed = pbuf * 3 * out_pad * 4 + 2 * cand_tk * out_pad * wb   # params + W tile (dbl)
        per_row = 2 * cand_tk * xb + 2 * out_pad * ob + 3 * out_pad * 4  # x/out/acc/temps
        cand_tm = _choose_tm(rows, per_row, fixed, budget)
        if cand_tm is not None:
            tm, tk = cand_tm, cand_tk
            break
    if tk is None:
        raise ValueError(
            "DNN Pallas kernel: even the minimal K-tiled configuration "
            f"(tk=128, out_pad={out_pad}) exceeds the VMEM budget ({budget} bytes); "
            "out_features is too large — an N-tiled variant would be required.")

    in_pad = _round_up(in_f, tk)
    if in_pad != in_f:
        # Zero padding is exact for the matmul reduction.
        x2 = jnp.pad(x2, ((0, 0), (0, in_pad - in_f)))
        w = jnp.pad(w, ((0, in_pad - in_f), (0, 0)))
    k_tiles = in_pad // tk
    n_row_tiles = _cdiv(rows, tm)
    cost = pl.CostEstimate(
        flops=2 * rows * in_pad * out_pad + 10 * rows * out_pad,
        transcendentals=rows * out_pad,
        bytes_accessed=(rows * in_pad * xb + n_row_tiles * in_pad * out_pad * wb
                        + 3 * out_pad * 4 + rows * out_pad * ob),
    )
    return pl.pallas_call(
        functools.partial(dnn_kernel_ktiled, n_valid=n_valid),
        out_shape=jax.ShapeDtypeStruct((rows, out_pad), out_dtype),
        grid_spec=pltpu.PrefetchScalarGridSpec(
            num_scalar_prefetch=0,
            grid=(n_row_tiles, k_tiles),
            in_specs=[
                pl.BlockSpec((tm, tk), lambda i, k: (i, k)),          # x tile
                pl.BlockSpec((tk, out_pad), lambda i, k: (k, 0)),     # W K-slab
                param_spec((1, out_pad), lambda i, k: (0, 0)),        # b
                param_spec((1, out_pad), lambda i, k: (0, 0)),        # gamma
                param_spec((1, out_pad), lambda i, k: (0, 0)),        # beta
            ],
            out_specs=pl.BlockSpec((tm, out_pad), lambda i, k: (i, 0)),
            scratch_shapes=[pltpu.VMEM((tm, out_pad), jnp.float32)],
        ),
        compiler_params=pltpu.CompilerParams(
            dimension_semantics=("parallel", "arbitrary"),
            vmem_limit_bytes=limit,
        ),
        cost_estimate=cost,
    )(x2, w, b2, g2, be2)


# ---------------------------------------------------------------------------
# Public wrapper
# ---------------------------------------------------------------------------

def dnn_forward(x, w, b, gamma, beta, *, matmul_dtype=None):
    """Fused Linear -> Dropout(eval: identity) -> Tanh -> LayerNorm.

    x: [..., in_features]; w: [in_features, out_features]; b/gamma/beta: [out_features].
    matmul_dtype: optionally cast x/W (e.g. jnp.bfloat16) for the MXU; the LayerNorm
    epilogue stays in f32.  Off by default to match the f32 reference numerics.
    """
    orig_shape = x.shape
    in_features = orig_shape[-1]
    out_features = w.shape[1]
    rows = math.prod(orig_shape[:-1]) if len(orig_shape) > 1 else 1
    out_dtype = x.dtype

    # Lane-dense output: pad the out-feature axis (params only, tiny) to a multiple of
    # 128.  The in-feature axis of x is NOT padded in the fused path — the x block uses
    # the full dim, so no extra HBM pass over the activations.
    out_pad = _round_up(out_features, LANE)
    x2 = x.reshape(rows, in_features)
    if matmul_dtype is not None:
        x2 = x2.astype(matmul_dtype)
        w = w.astype(matmul_dtype)
    if out_pad != out_features:
        w = jnp.pad(w, ((0, 0), (0, out_pad - out_features)))
        b = jnp.pad(b, (0, out_pad - out_features))
        gamma = jnp.pad(gamma, (0, out_pad - out_features))
        beta = jnp.pad(beta, (0, out_pad - out_features))
    b2 = b.reshape(1, out_pad)
    g2 = gamma.reshape(1, out_pad)
    be2 = beta.reshape(1, out_pad)

    budget, limit = _vmem_policy()

    # Prefer single-buffered constant params (pl.Buffered(1)); if this Pallas build
    # rejects pipeline_mode on TPU, re-plan and retry with default double buffering.
    try:
        out = _dnn_pallas(x2, w, b2, g2, be2, out_dtype, out_features,
                          True, budget, limit)
    except Exception:
        out = _dnn_pallas(x2, w, b2, g2, be2, out_dtype, out_features,
                          False, budget, limit)

    if out_pad != out_features:
        out = out[:, :out_features]
    return out.reshape(orig_shape[:-1] + (out_features,))


def reference_forward(x, w, b, gamma, beta):
    y = jnp.einsum("...i,io->...o", x, w) + b
    y = jnp.tanh(y)
    mean = jnp.mean(y, axis=-1, keepdims=True)
    var = jnp.mean((y - mean) ** 2, axis=-1, keepdims=True)
    return (y - mean) / jnp.sqrt(var + LN_EPS) * gamma + beta


if __name__ == "__main__":
    # Small shapes consistent with the module: batch=2, seq=8, hidden=32.
    batch, seq, in_features, out_features = 2, 8, 32, 32

    key = jax.random.PRNGKey(0)
    kx, kw, kb = jax.random.split(key, 3)

    x = jax.random.normal(kx, (batch, seq, in_features), dtype=jnp.float32)

    # Deterministic parameter init (matching nn.Linear's uniform bound 1/sqrt(in)).
    bound = 1.0 / jnp.sqrt(jnp.float32(in_features))
    w = jax.random.uniform(kw, (in_features, out_features), jnp.float32, -bound, bound)
    b = jax.random.uniform(kb, (out_features,), jnp.float32, -bound, bound)
    gamma = jnp.ones((out_features,), jnp.float32)   # LayerNorm weight init
    beta = jnp.zeros((out_features,), jnp.float32)   # LayerNorm bias init

    out = dnn_forward(x, w, b, gamma, beta)
    jax.block_until_ready(out)

    ref = reference_forward(x, w, b, gamma, beta)
    assert out.shape == (batch, seq, out_features)
    assert jnp.allclose(out, ref, atol=1e-4, rtol=1e-4), float(jnp.max(jnp.abs(out - ref)))

    print("KERNEL_OK")
</pallas_src>

<mosaic_0001>
module attributes {stable_mosaic.version = 11 : i64} {
  func.func @dnn_kernel_fused(%arg0: i32, %arg1: memref<16x32xf32, #tpu.memory_space<vmem>>, %arg2: memref<32x128xf32, #tpu.memory_space<vmem>>, %arg3: memref<1x128xf32, #tpu.memory_space<vmem>>, %arg4: memref<1x128xf32, #tpu.memory_space<vmem>>, %arg5: memref<1x128xf32, #tpu.memory_space<vmem>>, %arg6: memref<16x128xf32, #tpu.memory_space<vmem>>) attributes {dimension_semantics = [#tpu.dimension_semantics<parallel>], iteration_bounds = array<i64: 1>, scalar_prefetch = 0 : i64, scratch_operands = 0 : i64, tpu.core_type = #tpu.core_type<tc>, window_params = [{transform_indices = @transform_0, window_bounds = array<i64: 16, 32>}, {pipeline_mode = #tpu.pipeline_mode<synchronous>, transform_indices = @transform_1, window_bounds = array<i64: 32, 128>}, {pipeline_mode = #tpu.pipeline_mode<synchronous>, transform_indices = @transform_2, window_bounds = array<i64: 1, 128>}, {pipeline_mode = #tpu.pipeline_mode<synchronous>, transform_indices = @transform_3, window_bounds = array<i64: 1, 128>}, {pipeline_mode = #tpu.pipeline_mode<synchronous>, transform_indices = @transform_4, window_bounds = array<i64: 1, 128>}, {transform_indices = @transform_5, window_bounds = array<i64: 16, 128>}]} {
    %c0 = arith.constant 0 : index
    %c0_0 = arith.constant 0 : index
    %0 = vector.load %arg1[%c0, %c0_0] : memref<16x32xf32, #tpu.memory_space<vmem>>, vector<16x32xf32>
    %c0_1 = arith.constant 0 : index
    %c0_2 = arith.constant 0 : index
    %1 = vector.load %arg2[%c0_1, %c0_2] : memref<32x128xf32, #tpu.memory_space<vmem>>, vector<32x128xf32>
    %cst = arith.constant dense<0.000000e+00> : vector<16x128xf32>
    %2 = tpu.matmul %0, %1, %cst {dimension_numbers = #tpu.dot_dimension_numbers<[1], [0], [0], [1], [0, 0, 1, 1], [], []>} : vector<16x32xf32>, vector<32x128xf32>, vector<16x128xf32> -> vector<16x128xf32>
    %c0_3 = arith.constant 0 : index
    %c0_4 = arith.constant 0 : index
    %3 = vector.load %arg3[%c0_3, %c0_4] : memref<1x128xf32, #tpu.memory_space<vmem>>, vector<1x128xf32>
    %4 = vector.broadcast %3 : vector<1x128xf32> to vector<16x128xf32>
    %5 = arith.addf %2, %4 : vector<16x128xf32>
    %c0_5 = arith.constant 0 : index
    %c0_6 = arith.constant 0 : index
    %6 = vector.load %arg4[%c0_5, %c0_6] : memref<1x128xf32, #tpu.memory_space<vmem>>, vector<1x128xf32>
    %c0_7 = arith.constant 0 : index
    %c0_8 = arith.constant 0 : index
    %7 = vector.load %arg5[%c0_7, %c0_8] : memref<1x128xf32, #tpu.memory_space<vmem>>, vector<1x128xf32>
    %8 = math.tanh %5 : vector<16x128xf32>
    %cst_9 = arith.constant dense<0.000000e+00> : vector<16xf32>
    %9 = vector.multi_reduction <add>, %8, %cst_9 [1] : vector<16x128xf32> to vector<16xf32>
    %10 = vector.shape_cast %9 : vector<16xf32> to vector<16x1xf32>
    %cst_10 = arith.constant 3.125000e-02 : f32
    %11 = vector.broadcast %cst_10 : f32 to vector<16x1xf32>
    %12 = arith.mulf %10, %11 : vector<16x1xf32>
    %13 = arith.mulf %8, %8 : vector<16x128xf32>
    %cst_11 = arith.constant dense<0.000000e+00> : vector<16xf32>
    %14 = vector.multi_reduction <add>, %13, %cst_11 [1] : vector<16x128xf32> to vector<16xf32>
    %15 = vector.shape_cast %14 : vector<16xf32> to vector<16x1xf32>
    %cst_12 = arith.constant 3.125000e-02 : f32
    %16 = vector.broadcast %cst_12 : f32 to vector<16x1xf32>
    %17 = arith.mulf %15, %16 : vector<16x1xf32>
    %18 = arith.mulf %12, %12 : vector<16x1xf32>
    %19 = arith.subf %17, %18 : vector<16x1xf32>
    %20 = vector.broadcast %12 : vector<16x1xf32> to vector<16x128xf32>
    %21 = arith.subf %8, %20 : vector<16x128xf32>
    %cst_13 = arith.constant 9.99999974E-6 : f32
    %22 = vector.broadcast %cst_13 : f32 to vector<16x1xf32>
    %23 = arith.addf %19, %22 : vector<16x1xf32>
    %24 = math.rsqrt %23 : vector<16x1xf32>
    %25 = vector.broadcast %24 : vector<16x1xf32> to vector<16x128xf32>
    %26 = arith.mulf %21, %25 : vector<16x128xf32>
    %27 = vector.broadcast %6 : vector<1x128xf32> to vector<16x128xf32>
    %28 = arith.mulf %26, %27 : vector<16x128xf32>
    %29 = vector.broadcast %7 : vector<1x128xf32> to vector<16x128xf32>
    %30 = arith.addf %28, %29 : vector<16x128xf32>
    %c0_14 = arith.constant 0 : index
    %c0_15 = arith.constant 0 : index
    %31 = vector.load %arg6[%c0_14, %c0_15] : memref<16x128xf32, #tpu.memory_space<vmem>>, vector<16x128xf32>
    tpu.vector_store %arg6[%c0_14, %c0_15], %30 {strides = array<i32>} : memref<16x128xf32, #tpu.memory_space<vmem>>, vector<16x128xf32>,
    return
  }
  func.func @transform_0(%arg0: i32) -> (i32, i32) {
    %c0_i32 = arith.constant 0 : i32
    %c0_i32_0 = arith.constant 0 : i32
    return %arg0, %c0_i32 : i32, i32
  }
  func.func @transform_1(%arg0: i32) -> (i32, i32) {
    %c0_i32 = arith.constant 0 : i32
    %c0_i32_0 = arith.constant 0 : i32
    %c0_i32_1 = arith.constant 0 : i32
    return %c0_i32, %c0_i32_0 : i32, i32
  }
  func.func @transform_2(%arg0: i32) -> (i32, i32) {
    %c0_i32 = arith.constant 0 : i32
    %c0_i32_0 = arith.constant 0 : i32
    %c0_i32_1 = arith.constant 0 : i32
    return %c0_i32, %c0_i32_0 : i32, i32
  }
  func.func @transform_3(%arg0: i32) -> (i32, i32) {
    %c0_i32 = arith.constant 0 : i32
    %c0_i32_0 = arith.constant 0 : i32
    %c0_i32_1 = arith.constant 0 : i32
    return %c0_i32, %c0_i32_0 : i32, i32
  }
  func.func @transform_4(%arg0: i32) -> (i32, i32) {
    %c0_i32 = arith.constant 0 : i32
    %c0_i32_0 = arith.constant 0 : i32
    %c0_i32_1 = arith.constant 0 : i32
    return %c0_i32, %c0_i32_0 : i32, i32
  }
  func.func @transform_5(%arg0: i32) -> (i32, i32) {
    %c0_i32 = arith.constant 0 : i32
    %c0_i32_0 = arith.constant 0 : i32
    return %arg0, %c0_i32 : i32, i32
  }
}

module attributes {stable_mosaic.version = 11 : i64} {
  func.func @dnn_kernel_fused(%arg0: i32, %arg1: memref<16x32xf32, #tpu.memory_space<vmem>>, %arg2: memref<32x128xf32, #tpu.memory_space<vmem>>, %arg3: memref<1x128xf32, #tpu.memory_space<vmem>>, %arg4: memref<1x128xf32, #tpu.memory_space<vmem>>, %arg5: memref<1x128xf32, #tpu.memory_space<vmem>>, %arg6: memref<16x128xf32, #tpu.memory_space<vmem>>) attributes {dimension_semantics = [#tpu.dimension_semantics<parallel>], iteration_bounds = array<i64: 1>, scalar_prefetch = 0 : i64, scratch_operands = 0 : i64, tpu.core_type = #tpu.core_type<tc>, window_params = [{transform_indices = @transform_0, window_bounds = array<i64: 16, 32>}, {pipeline_mode = #tpu.pipeline_mode<synchronous>, transform_indices = @transform_1, window_bounds = array<i64: 32, 128>}, {pipeline_mode = #tpu.pipeline_mode<synchronous>, transform_indices = @transform_2, window_bounds = array<i64: 1, 128>}, {pipeline_mode = #tpu.pipeline_mode<synchronous>, transform_indices = @transform_3, window_bounds = array<i64: 1, 128>}, {pipeline_mode = #tpu.pipeline_mode<synchronous>, transform_indices = @transform_4, window_bounds = array<i64: 1, 128>}, {transform_indices = @transform_5, window_bounds = array<i64: 16, 128>}]} {
    %c0 = arith.constant 0 : index
    %c0_0 = arith.constant 0 : index
    %0 = vector.load %arg1[%c0, %c0_0] : memref<16x32xf32, #tpu.memory_space<vmem>>, vector<16x32xf32>
    %c0_1 = arith.constant 0 : index
    %c0_2 = arith.constant 0 : index
    %1 = vector.load %arg2[%c0_1, %c0_2] : memref<32x128xf32, #tpu.memory_space<vmem>>, vector<32x128xf32>
    %cst = arith.constant dense<0.000000e+00> : vector<16x128xf32>
    %2 = tpu.matmul %0, %1, %cst {dimension_numbers = #tpu.dot_dimension_numbers<[1], [0], [0], [1], [0, 0, 1, 1], [], []>} : vector<16x32xf32>, vector<32x128xf32>, vector<16x128xf32> -> vector<16x128xf32>
    %c0_3 = arith.constant 0 : index
    %c0_4 = arith.constant 0 : index
    %3 = vector.load %arg3[%c0_3, %c0_4] : memref<1x128xf32, #tpu.memory_space<vmem>>, vector<1x128xf32>
    %4 = vector.broadcast %3 : vector<1x128xf32> to vector<16x128xf32>
    %5 = arith.addf %2, %4 : vector<16x128xf32>
    %c0_5 = arith.constant 0 : index
    %c0_6 = arith.constant 0 : index
    %6 = vector.load %arg4[%c0_5, %c0_6] : memref<1x128xf32, #tpu.memory_space<vmem>>, vector<1x128xf32>
    %c0_7 = arith.constant 0 : index
    %c0_8 = arith.constant 0 : index
    %7 = vector.load %arg5[%c0_7, %c0_8] : memref<1x128xf32, #tpu.memory_space<vmem>>, vector<1x128xf32>
    %8 = math.tanh %5 : vector<16x128xf32>
    %cst_9 = arith.constant dense<0.000000e+00> : vector<16xf32>
    %9 = vector.multi_reduction <add>, %8, %cst_9 [1] : vector<16x128xf32> to vector<16xf32>
    %10 = vector.shape_cast %9 : vector<16xf32> to vector<16x1xf32>
    %cst_10 = arith.constant 3.125000e-02 : f32
    %11 = vector.broadcast %cst_10 : f32 to vector<16x1xf32>
    %12 = arith.mulf %10, %11 : vector<16x1xf32>
    %13 = arith.mulf %8, %8 : vector<16x128xf32>
    %cst_11 = arith.constant dense<0.000000e+00> : vector<16xf32>
    %14 = vector.multi_reduction <add>, %13, %cst_11 [1] : vector<16x128xf32> to vector<16xf32>
    %15 = vector.shape_cast %14 : vector<16xf32> to vector<16x1xf32>
    %cst_12 = arith.constant 3.125000e-02 : f32
    %16 = vector.broadcast %cst_12 : f32 to vector<16x1xf32>
    %17 = arith.mulf %15, %16 : vector<16x1xf32>
    %18 = arith.mulf %12, %12 : vector<16x1xf32>
    %19 = arith.subf %17, %18 : vector<16x1xf32>
    %20 = vector.broadcast %12 : vector<16x1xf32> to vector<16x128xf32>
    %21 = arith.subf %8, %20 : vector<16x128xf32>
    %cst_13 = arith.constant 9.99999974E-6 : f32
    %22 = vector.broadcast %cst_13 : f32 to vector<16x1xf32>
    %23 = arith.addf %19, %22 : vector<16x1xf32>
    %24 = math.rsqrt %23 : vector<16x1xf32>
    %25 = vector.broadcast %24 : vector<16x1xf32> to vector<16x128xf32>
    %26 = arith.mulf %21, %25 : vector<16x128xf32>
    %27 = vector.broadcast %6 : vector<1x128xf32> to vector<16x128xf32>
    %28 = arith.mulf %26, %27 : vector<16x128xf32>
    %29 = vector.broadcast %7 : vector<1x128xf32> to vector<16x128xf32>
    %30 = arith.addf %28, %29 : vector<16x128xf32>
    %c0_14 = arith.constant 0 : index
    %c0_15 = arith.constant 0 : index
    %31 = vector.load %arg6[%c0_14, %c0_15] : memref<16x128xf32, #tpu.memory_space<vmem>>, vector<16x128xf32>
    tpu.vector_store %arg6[%c0_14, %c0_15], %30 {strides = array<i32>} : memref<16x128xf32, #tpu.memory_space<vmem>>, vector<16x128xf32>,
    return
  }
  func.func @transform_0(%arg0: i32) -> (i32, i32) {
    %c0_i32 = arith.constant 0 : i32
    %c0_i32_0 = arith.constant 0 : i32
    return %arg0, %c0_i32 : i32, i32
  }
  func.func @transform_1(%arg0: i32) -> (i32, i32) {
    %c0_i32 = arith.constant 0 : i32
    %c0_i32_0 = arith.constant 0 : i32
    %c0_i32_1 = arith.constant 0 : i32
    return %c0_i32, %c0_i32_0 : i32, i32
  }
  func.func @transform_2(%arg0: i32) -> (i32, i32) {
    %c0_i32 = arith.constant 0 : i32
    %c0_i32_0 = arith.constant 0 : i32
    %c0_i32_1 = arith.constant 0 : i32
    return %c0_i32, %c0_i32_0 : i32, i32
  }
  func.func @transform_3(%arg0: i32) -> (i32, i32) {
    %c0_i32 = arith.constant 0 : i32
    %c0_i32_0 = arith.constant 0 : i32
    %c0_i32_1 = arith.constant 0 : i32
    return %c0_i32, %c0_i32_0 : i32, i32
  }
  func.func @transform_4(%arg0: i32) -> (i32, i32) {
    %c0_i32 = arith.constant 0 : i32
    %c0_i32_0 = arith.constant 0 : i32
    %c0_i32_1 = arith.constant 0 : i32
    return %c0_i32, %c0_i32_0 : i32, i32
  }
  func.func @transform_5(%arg0: i32) -> (i32, i32) {
    %c0_i32 = arith.constant 0 : i32
    %c0_i32_0 = arith.constant 0 : i32
    return %arg0, %c0_i32 : i32, i32
  }
}

</mosaic_0001>

<llo_original>
// kernel: tpu_custom_call.1
$region0: #{tpu_custom_call.1}
  #allocation0 [shape = 'u32[]', space=smem, size = 0x4, offset = 0x4, fixed_abs, tag = 'smem constant byte address 0x4 - core index']
  #allocation1 [shape = 'u32[144,128]{1,0:T(1,128)}', space=vmem, size = 0x12000, scoped, tag = 'internal scratch']
  %s0 = inlined_call_operand.hbm [shape: f32[16,32], index: 0, kind: input, shape index: {}]
  %s1 = inlined_call_operand.hbm [shape: f32[32,128], index: 1, kind: input, shape index: {}]
  %s2 = inlined_call_operand.vmem [shape: f32[1,128], index: 2, kind: input, shape index: {}]
  %s3 = inlined_call_operand.vmem [shape: f32[1,128], index: 3, kind: input, shape index: {}]
  %s4 = inlined_call_operand.vmem [shape: f32[1,128], index: 4, kind: input, shape index: {}]
  %s5 = inlined_call_operand.hbm [shape: f32[16,128], index: 5, kind: output, shape index: {}]
  %s6 = sld [smem:[#allocation0]]
  $region38: #{tpu_custom_call.1} parent=0
    _
  %s8 = ssub.s32 1, %s6
  %s9 = scalar_select 0, %s8, %s6
  $region1: #{tpu_custom_call.1} parent=0
    #allocation2 [shape = 'u8[8192]{0}', space=vmem, size = 0x2000, scoped, tag = 'input window, operand 0, single buffered']
    #allocation3 [shape = 's32[1]{0}', space=sflag, size = 0x4, scoped, tag = 'scoped memory for tpu_custom_call.1']
    #allocation4 [shape = 's32[1]{0}', space=sflag, size = 0x4, scoped, tag = 'scoped memory for tpu_custom_call.1']
    #allocation5 [shape = 'u8[16384]{0}', space=vmem, size = 0x4000, scoped, tag = 'input window, operand 1, single buffered']
    #allocation6 [shape = 's32[1]{0}', space=sflag, size = 0x4, scoped, tag = 'scoped memory for tpu_custom_call.1']
    #allocation7 [shape = 'u8[8192]{0}', space=vmem, size = 0x2000, scoped, tag = 'output window, operand 0, single buffered']
    %10 = vsyncpa [#allocation3], 0
    %11 = vsyncpa [#allocation6], 0
    %12 = vsyncpa [#allocation4], 0
    // Predicated region
    $region2: #{tpu_custom_call.1} parent=1 // pred_check
      _
    $region3: #{tpu_custom_call.1} parent=1 // pred_check_branch
      %14 = sbr.rel (0) target = $region5
    $region4: #{tpu_custom_call.1} parent=1 // pred_region
      %s16 = ssub.s32 256, 256
      %17 = vsyncadd [#allocation3], %s16
      %s18 = sshll.u32 [#allocation2], 4
      %s19 = int_to_ptr.vmem [resolvable:$true] %s18
      %24 = dma.hbm_to_vmem [thread:$0]  %s0, 256, %s19, [#allocation3], 128, 128, 8
    $region5: #{tpu_custom_call.1} parent=1 // pred_fallthru
      _
    // Predicated region
    $region6: #{tpu_custom_call.1} parent=1 // pred_check
      _
    $region7: #{tpu_custom_call.1} parent=1 // pred_check_branch
      %26 = sbr.rel (0) target = $region9
    $region8: #{tpu_custom_call.1} parent=1 // pred_region
      %s28 = ssub.s32 512, 512
      %29 = vsyncadd [#allocation6], %s28
      %s30 = sshll.u32 [#allocation5], 4
      %s31 = int_to_ptr.vmem [resolvable:$true] %s30
      %36 = dma.hbm_to_vmem [thread:$0]  %s1, 512, %s31, [#allocation6], 128, 128, 8
    $region9: #{tpu_custom_call.1} parent=1 // pred_fallthru
      _
    // Predicated region
    $region10: #{tpu_custom_call.1} parent=1 // pred_check
      _
    $region11: #{tpu_custom_call.1} parent=1 // pred_check_branch
      %38 = sbr.rel (0) target = $region13
    $region12: #{tpu_custom_call.1} parent=1 // pred_region
      _
    $region13: #{tpu_custom_call.1} parent=1 // pred_fallthru
      _
    // Predicated region
    $region14: #{tpu_custom_call.1} parent=1 // pred_check
      _
    $region15: #{tpu_custom_call.1} parent=1 // pred_check_branch
      %40 = sbr.rel (0) target = $region17
    $region16: #{tpu_custom_call.1} parent=1 // pred_region
      _
    $region17: #{tpu_custom_call.1} parent=1 // pred_fallthru
      _
    // Predicated region
    $region18: #{tpu_custom_call.1} parent=1 // pred_check
      _
    $region19: #{tpu_custom_call.1} parent=1 // pred_check_branch
      %42 = sbr.rel (0) target = $region21
    $region20: #{tpu_custom_call.1} parent=1 // pred_region
      _
    $region21: #{tpu_custom_call.1} parent=1 // pred_fallthru
      _
    // Predicated region
    $region22: #{tpu_custom_call.1} parent=1 // pred_check
      _
    $region23: #{tpu_custom_call.1} parent=1 // pred_check_branch
      %44 = sbr.rel (0) target = $region25
    $region24: #{tpu_custom_call.1} parent=1 // pred_region
      %45 = dma.done [#allocation3], 256
    $region25: #{tpu_custom_call.1} parent=1 // pred_fallthru
      _
    // Predicated region
    $region26: #{tpu_custom_call.1} parent=1 // pred_check
      _
    $region27: #{tpu_custom_call.1} parent=1 // pred_check_branch
      %47 = sbr.rel (0) target = $region29
    $region28: #{tpu_custom_call.1} parent=1 // pred_region
      %48 = dma.done [#allocation6], 512
    $region29: #{tpu_custom_call.1} parent=1 // pred_fallthru
      _
    %v49 = vld [vmem:[#allocation2] sm:$0xff]
    %v50 = vld [vmem:[#allocation2 + $0x8] sm:$0xff]
    %v51 = vld [vmem:[#allocation5] sm:$0xff]
    %v52 = vld [vmem:[#allocation5 + $0x8] sm:$0xff]
    %v53 = vld [vmem:[#allocation5 + $0x10] sm:$0xff]
    %v54 = vld [vmem:[#allocation5 + $0x18] sm:$0xff]
    %v55 = vld [vmem:[%s2] sm:$0x1]
    %v57 = vlaneseq
    %v58 = vshrl.u32 %v57, 7
    %v59 = vsub.s32 0, %v58
    %v60 = vrot.slane %v55, %v59
    %vm62 = vcmask 261120
    %v64 = vsel %vm62, %v49, 0
    %v67 = vsel %vm62, %v50, 0
    %69 = vmatprep.subr.mxu0 0.0
    %70 = vmatpush1.msra.mxu0 %v51
    %71 = vmatprep.subr.mxu0 0.0
    %72 = vmatpush1.msra.mxu0 %v52
    %73 = vmatprep.subr.mxu0 0.0
    %74 = vmatpush1.msra.mxu0 %v53
    %75 = vmatprep.subr.mxu0 0.0
    %76 = vmatpush1.msra.mxu0 %v54
    %77 = vmatprep.subr.mxu0 0.0
    %78 = vmatpush1.msra.mxu0 0.0
    %79 = vmatprep.subr.mxu0 0.0
    %80 = vmatpush1.msra.mxu0 0.0
    %81 = vmatprep.subr.mxu0 0.0
    %82 = vmatpush1.msra.mxu0 0.0
    %83 = vmatprep.subr.mxu0 0.0
    %84 = vmatpush1.msra.mxu0 0.0
    %85 = vmatprep.subr.mxu0 0.0
    %86 = vmatpush1.msra.mxu0 0.0
    %87 = vmatprep.subr.mxu0 0.0
    %88 = vmatpush1.msra.mxu0 0.0
    %89 = vmatprep.subr.mxu0 0.0
    %90 = vmatpush1.msra.mxu0 0.0
    %91 = vmatprep.subr.mxu0 0.0
    %92 = vmatpush1.msra.mxu0 0.0
    %93 = vmatprep.subr.mxu0 0.0
    %94 = vmatpush1.msra.mxu0 0.0
    %95 = vmatprep.subr.mxu0 0.0
    %96 = vmatpush1.msra.mxu0 0.0
    %97 = vmatprep.subr.mxu0 0.0
    %98 = vmatpush1.msra.mxu0 0.0
    %99 = vmatprep.subr.mxu0 0.0
    %100 = vmatpush1.msra.mxu0 0.0
    %101 = vmatprep.subr.mxu0 0.0
    %102 = vmatpush1.msra.mxu0 0.0
    %103 = vmatprep.subr.mxu0 0.0
    %104 = vmatpush1.msra.mxu0 0.0
    %105 = vmatprep.subr.mxu0 0.0
    %106 = vmatpush1.msra.mxu0 0.0
    %107 = vmatprep.subr.mxu0 0.0
    %108 = vmatpush1.msra.mxu0 0.0
    %109 = vmatprep.subr.mxu0 0.0
    %110 = vmatpush1.msra.mxu0 0.0
    %111 = vmatprep.subr.mxu0 0.0
    %112 = vmatpush1.msra.mxu0 0.0
    %113 = vmatprep.subr.mxu0 0.0
    %114 = vmatpush1.msra.mxu0 0.0
    %115 = vmatprep.subr.mxu0 0.0
    %116 = vmatpush1.msra.mxu0 0.0
    %117 = vmatprep.subr.mxu0 0.0
    %118 = vmatpush1.msra.mxu0 0.0
    %119 = vmatprep.subr.mxu0 0.0
    %120 = vmatpush1.msra.mxu0 0.0
    %121 = vmatprep.subr.mxu0 0.0
    %122 = vmatpush1.msra.mxu0 0.0
    %123 = vmatprep.subr.mxu0 0.0
    %124 = vmatpush1.msra.mxu0 0.0
    %125 = vmatprep.subr.mxu0 0.0
    %126 = vmatpush1.msra.mxu0 0.0
    %127 = vmatprep.subr.mxu0 0.0
    %128 = vmatpush1.msra.mxu0 0.0
    %129 = vmatprep.subr.mxu0 0.0
    %130 = vmatpush1.msra.mxu0 0.0
    %131 = vmatprep.subr.mxu0 0.0
    %132 = vmatpush1.msra.mxu0 0.0
    %133 = vmatprep.mubr.f32.mxu0 0.0
    %134 = vmatmul.mubr.f32.gmra.mrb[0].mxu0 %v64
    %v135 = vpop.f32.mrb[0].mxu0
    %v136 = vadd.f32 %v60, %v135
    %v137 = vpop.f32.mrb[0].mxu0
    %138 = vmatprep.mubr.f32.mxu0 0.0
    %139 = vmatmul.mubr.f32.gmra.mrb[0].mxu0 %v67
    %v140 = vpop.f32.mrb[0].mxu0
    %v141 = vadd.f32 %v60, %v140
    %v142 = vpop.f32.mrb[0].mxu0
    %143 = vdwg.mxu0
    %v144 = vld [vmem:[%s3] sm:$0x1]
    %v145 = vld [vmem:[%s4] sm:$0x1]
    %v146 = vtanh.pop %v136
    %v147 = vtanh.pop %v141
    %148 = vadd.xlane.f32.xlu0 %v146
    %v149 = vpop.xlane.xlu0 %148
    %150 = vadd.xlane.f32.xlu0 %v147
    %v151 = vpop.xlane.xlu0 %150
    %v152 = vmul.f32 %v149, 0.03125
    %v153 = vmul.f32 %v151, 0.03125
    %v154 = vmul.f32 %v146, %v146
    %v155 = vmul.f32 %v147, %v147
    %156 = vadd.xlane.f32.xlu0 %v154
    %v157 = vpop.xlane.xlu0 %156
    %158 = vadd.xlane.f32.xlu0 %v155
    %v159 = vpop.xlane.xlu0 %158
    %v160 = vmul.f32 %v157, 0.03125
    %v161 = vmul.f32 %v159, 0.03125
    %v162 = vmul.f32 %v152, %v152
    %v163 = vmul.f32 %v153, %v153
    %v164 = vsub.f32 %v160, %v162
    %v165 = vsub.f32 %v161, %v163
    %v166 = vsub.f32 %v146, %v152
    %v167 = vsub.f32 %v147, %v153
    %v168 = vadd.f32 %v164, 1e-05
    %v169 = vadd.f32 %v165, 1e-05
    %v170 = vrsqrt.pop %v168
    %v171 = vrsqrt.pop %v169
    %v172 = vmul.f32 %v166, %v170
    %v173 = vmul.f32 %v167, %v171
    %v175 = vlaneseq
    %v176 = vshrl.u32 %v175, 7
    %v177 = vsub.s32 0, %v176
    %v178 = vrot.slane %v144, %v177
    %v180 = vmul.f32 %v172, %v178
    %v181 = vmul.f32 %v173, %v178
    %v183 = vlaneseq
    %v184 = vshrl.u32 %v183, 7
    %v185 = vsub.s32 0, %v184
    %v186 = vrot.slane %v145, %v185
    %v188 = vadd.f32 %v180, %v186
    %v189 = vadd.f32 %v181, %v186
    %190 = vst [vmem:[#allocation7] sm:$0xff] %v188
    %191 = vst [vmem:[#allocation7 + $0x8] sm:$0xff] %v189
    // Predicated region
    $region30: #{tpu_custom_call.1} parent=1 // pred_check
      _
    $region31: #{tpu_custom_call.1} parent=1 // pred_check_branch
      %193 = sbr.rel (0) target = $region33
    $region32: #{tpu_custom_call.1} parent=1 // pred_region
      %s195 = ssub.s32 256, 256
      %196 = vsyncadd [#allocation4], %s195
      %s197 = sshll.u32 [#allocation7], 4
      %s198 = int_to_ptr.vmem [resolvable:$true] %s197
      %203 = dma.vmem_to_hbm [thread:$0]  %s198, 256, %s5, [#allocation4], 128, 128, 8
    $region33: #{tpu_custom_call.1} parent=1 // pred_fallthru
      _
    // Predicated region
    $region34: #{tpu_custom_call.1} parent=1 // pred_check
      _
    $region35: #{tpu_custom_call.1} parent=1 // pred_check_branch
      %205 = sbr.rel (0) target = $region37
    $region36: #{tpu_custom_call.1} parent=1 // pred_region
      %206 = dma.done [#allocation4], 256
    $region37: #{tpu_custom_call.1} parent=1 // pred_fallthru
      _
    %207 = vsyncpa [#allocation3], 1
    %208 = vsyncpa [#allocation6], 1
    %209 = vsyncpa [#allocation4], 1

// kernel: tpu_custom_call.1
$region0: #{tpu_custom_call.1}
  #allocation0 [shape = 'u32[]', space=smem, size = 0x4, offset = 0x4, fixed_abs, tag = 'smem constant byte address 0x4 - core index']
  #allocation1 [shape = 'u32[144,128]{1,0:T(1,128)}', space=vmem, size = 0x12000, scoped, tag = 'internal scratch']
  %s0 = inlined_call_operand.hbm [shape: f32[16,32], index: 0, kind: input, shape index: {}]
  %s1 = inlined_call_operand.hbm [shape: f32[32,128], index: 1, kind: input, shape index: {}]
  %s2 = inlined_call_operand.vmem [shape: f32[1,128], index: 2, kind: input, shape index: {}]
  %s3 = inlined_call_operand.vmem [shape: f32[1,128], index: 3, kind: input, shape index: {}]
  %s4 = inlined_call_operand.vmem [shape: f32[1,128], index: 4, kind: input, shape index: {}]
  %s5 = inlined_call_operand.hbm [shape: f32[16,128], index: 5, kind: output, shape index: {}]
  %s6 = sld [smem:[#allocation0]]
  $region38: #{tpu_custom_call.1} parent=0
    _
  %s8 = ssub.s32 1, %s6
  %s9 = scalar_select 0, %s8, %s6
  $region1: #{tpu_custom_call.1} parent=0
    #allocation2 [shape = 'u8[8192]{0}', space=vmem, size = 0x2000, scoped, tag = 'input window, operand 0, single buffered']
    #allocation3 [shape = 's32[1]{0}', space=sflag, size = 0x4, scoped, tag = 'scoped memory for tpu_custom_call.1']
    #allocation4 [shape = 's32[1]{0}', space=sflag, size = 0x4, scoped, tag = 'scoped memory for tpu_custom_call.1']
    #allocation5 [shape = 'u8[16384]{0}', space=vmem, size = 0x4000, scoped, tag = 'input window, operand 1, single buffered']
    #allocation6 [shape = 's32[1]{0}', space=sflag, size = 0x4, scoped, tag = 'scoped memory for tpu_custom_call.1']
    #allocation7 [shape = 'u8[8192]{0}', space=vmem, size = 0x2000, scoped, tag = 'output window, operand 0, single buffered']
    %10 = vsyncpa [#allocation3], 0
    %11 = vsyncpa [#allocation6], 0
    %12 = vsyncpa [#allocation4], 0
    // Predicated region
    $region2: #{tpu_custom_call.1} parent=1 // pred_check
      _
    $region3: #{tpu_custom_call.1} parent=1 // pred_check_branch
      %14 = sbr.rel (0) target = $region5
    $region4: #{tpu_custom_call.1} parent=1 // pred_region
      %s16 = ssub.s32 256, 256
      %17 = vsyncadd [#allocation3], %s16
      %s18 = sshll.u32 [#allocation2], 4
      %s19 = int_to_ptr.vmem [resolvable:$true] %s18
      %24 = dma.hbm_to_vmem [thread:$0]  %s0, 256, %s19, [#allocation3], 128, 128, 8
    $region5: #{tpu_custom_call.1} parent=1 // pred_fallthru
      _
    // Predicated region
    $region6: #{tpu_custom_call.1} parent=1 // pred_check
      _
    $region7: #{tpu_custom_call.1} parent=1 // pred_check_branch
      %26 = sbr.rel (0) target = $region9
    $region8: #{tpu_custom_call.1} parent=1 // pred_region
      %s28 = ssub.s32 512, 512
      %29 = vsyncadd [#allocation6], %s28
      %s30 = sshll.u32 [#allocation5], 4
      %s31 = int_to_ptr.vmem [resolvable:$true] %s30
      %36 = dma.hbm_to_vmem [thread:$0]  %s1, 512, %s31, [#allocation6], 128, 128, 8
    $region9: #{tpu_custom_call.1} parent=1 // pred_fallthru
      _
    // Predicated region
    $region10: #{tpu_custom_call.1} parent=1 // pred_check
      _
    $region11: #{tpu_custom_call.1} parent=1 // pred_check_branch
      %38 = sbr.rel (0) target = $region13
    $region12: #{tpu_custom_call.1} parent=1 // pred_region
      _
    $region13: #{tpu_custom_call.1} parent=1 // pred_fallthru
      _
    // Predicated region
    $region14: #{tpu_custom_call.1} parent=1 // pred_check
      _
    $region15: #{tpu_custom_call.1} parent=1 // pred_check_branch
      %40 = sbr.rel (0) target = $region17
    $region16: #{tpu_custom_call.1} parent=1 // pred_region
      _
    $region17: #{tpu_custom_call.1} parent=1 // pred_fallthru
      _
    // Predicated region
    $region18: #{tpu_custom_call.1} parent=1 // pred_check
      _
    $region19: #{tpu_custom_call.1} parent=1 // pred_check_branch
      %42 = sbr.rel (0) target = $region21
    $region20: #{tpu_custom_call.1} parent=1 // pred_region
      _
    $region21: #{tpu_custom_call.1} parent=1 // pred_fallthru
      _
    // Predicated region
    $region22: #{tpu_custom_call.1} parent=1 // pred_check
      _
    $region23: #{tpu_custom_call.1} parent=1 // pred_check_branch
      %44 = sbr.rel (0) target = $region25
    $region24: #{tpu_custom_call.1} parent=1 // pred_region
      %45 = dma.done [#allocation3], 256
    $region25: #{tpu_custom_call.1} parent=1 // pred_fallthru
      _
    // Predicated region
    $region26: #{tpu_custom_call.1} parent=1 // pred_check
      _
    $region27: #{tpu_custom_call.1} parent=1 // pred_check_branch
      %47 = sbr.rel (0) target = $region29
    $region28: #{tpu_custom_call.1} parent=1 // pred_region
      %48 = dma.done [#allocation6], 512
    $region29: #{tpu_custom_call.1} parent=1 // pred_fallthru
      _
    %v49 = vld [vmem:[#allocation2] sm:$0xff]
    %v50 = vld [vmem:[#allocation2 + $0x8] sm:$0xff]
    %v51 = vld [vmem:[#allocation5] sm:$0xff]
    %v52 = vld [vmem:[#allocation5 + $0x8] sm:$0xff]
    %v53 = vld [vmem:[#allocation5 + $0x10] sm:$0xff]
    %v54 = vld [vmem:[#allocation5 + $0x18] sm:$0xff]
    %v55 = vld [vmem:[%s2] sm:$0x1]
    %v57 = vlaneseq
    %v58 = vshrl.u32 %v57, 7
    %v59 = vsub.s32 0, %v58
    %v60 = vrot.slane %v55, %v59
    %vm62 = vcmask 261120
    %v64 = vsel %vm62, %v49, 0
    %v67 = vsel %vm62, %v50, 0
    %69 = vmatprep.subr.mxu0 0.0
    %70 = vmatpush1.msra.mxu0 %v51
    %71 = vmatprep.subr.mxu0 0.0
    %72 = vmatpush1.msra.mxu0 %v52
    %73 = vmatprep.subr.mxu0 0.0
    %74 = vmatpush1.msra.mxu0 %v53
    %75 = vmatprep.subr.mxu0 0.0
    %76 = vmatpush1.msra.mxu0 %v54
    %77 = vmatprep.subr.mxu0 0.0
    %78 = vmatpush1.msra.mxu0 0.0
    %79 = vmatprep.subr.mxu0 0.0
    %80 = vmatpush1.msra.mxu0 0.0
    %81 = vmatprep.subr.mxu0 0.0
    %82 = vmatpush1.msra.mxu0 0.0
    %83 = vmatprep.subr.mxu0 0.0
    %84 = vmatpush1.msra.mxu0 0.0
    %85 = vmatprep.subr.mxu0 0.0
    %86 = vmatpush1.msra.mxu0 0.0
    %87 = vmatprep.subr.mxu0 0.0
    %88 = vmatpush1.msra.mxu0 0.0
    %89 = vmatprep.subr.mxu0 0.0
    %90 = vmatpush1.msra.mxu0 0.0
    %91 = vmatprep.subr.mxu0 0.0
    %92 = vmatpush1.msra.mxu0 0.0
    %93 = vmatprep.subr.mxu0 0.0
    %94 = vmatpush1.msra.mxu0 0.0
    %95 = vmatprep.subr.mxu0 0.0
    %96 = vmatpush1.msra.mxu0 0.0
    %97 = vmatprep.subr.mxu0 0.0
    %98 = vmatpush1.msra.mxu0 0.0
    %99 = vmatprep.subr.mxu0 0.0
    %100 = vmatpush1.msra.mxu0 0.0
    %101 = vmatprep.subr.mxu0 0.0
    %102 = vmatpush1.msra.mxu0 0.0
    %103 = vmatprep.subr.mxu0 0.0
    %104 = vmatpush1.msra.mxu0 0.0
    %105 = vmatprep.subr.mxu0 0.0
    %106 = vmatpush1.msra.mxu0 0.0
    %107 = vmatprep.subr.mxu0 0.0
    %108 = vmatpush1.msra.mxu0 0.0
    %109 = vmatprep.subr.mxu0 0.0
    %110 = vmatpush1.msra.mxu0 0.0
    %111 = vmatprep.subr.mxu0 0.0
    %112 = vmatpush1.msra.mxu0 0.0
    %113 = vmatprep.subr.mxu0 0.0
    %114 = vmatpush1.msra.mxu0 0.0
    %115 = vmatprep.subr.mxu0 0.0
    %116 = vmatpush1.msra.mxu0 0.0
    %117 = vmatprep.subr.mxu0 0.0
    %118 = vmatpush1.msra.mxu0 0.0
    %119 = vmatprep.subr.mxu0 0.0
    %120 = vmatpush1.msra.mxu0 0.0
    %121 = vmatprep.subr.mxu0 0.0
    %122 = vmatpush1.msra.mxu0 0.0
    %123 = vmatprep.subr.mxu0 0.0
    %124 = vmatpush1.msra.mxu0 0.0
    %125 = vmatprep.subr.mxu0 0.0
    %126 = vmatpush1.msra.mxu0 0.0
    %127 = vmatprep.subr.mxu0 0.0
    %128 = vmatpush1.msra.mxu0 0.0
    %129 = vmatprep.subr.mxu0 0.0
    %130 = vmatpush1.msra.mxu0 0.0
    %131 = vmatprep.subr.mxu0 0.0
    %132 = vmatpush1.msra.mxu0 0.0
    %133 = vmatprep.mubr.f32.mxu0 0.0
    %134 = vmatmul.mubr.f32.gmra.mrb[0].mxu0 %v64
    %v135 = vpop.f32.mrb[0].mxu0
    %v136 = vadd.f32 %v60, %v135
    %v137 = vpop.f32.mrb[0].mxu0
    %138 = vmatprep.mubr.f32.mxu0 0.0
    %139 = vmatmul.mubr.f32.gmra.mrb[0].mxu0 %v67
    %v140 = vpop.f32.mrb[0].mxu0
    %v141 = vadd.f32 %v60, %v140
    %v142 = vpop.f32.mrb[0].mxu0
    %143 = vdwg.mxu0
    %v144 = vld [vmem:[%s3] sm:$0x1]
    %v145 = vld [vmem:[%s4] sm:$0x1]
    %v146 = vtanh.pop %v136
    %v147 = vtanh.pop %v141
    %148 = vadd.xlane.f32.xlu0 %v146
    %v149 = vpop.xlane.xlu0 %148
    %150 = vadd.xlane.f32.xlu0 %v147
    %v151 = vpop.xlane.xlu0 %150
    %v152 = vmul.f32 %v149, 0.03125
    %v153 = vmul.f32 %v151, 0.03125
    %v154 = vmul.f32 %v146, %v146
    %v155 = vmul.f32 %v147, %v147
    %156 = vadd.xlane.f32.xlu0 %v154
    %v157 = vpop.xlane.xlu0 %156
    %158 = vadd.xlane.f32.xlu0 %v155
    %v159 = vpop.xlane.xlu0 %158
    %v160 = vmul.f32 %v157, 0.03125
    %v161 = vmul.f32 %v159, 0.03125
    %v162 = vmul.f32 %v152, %v152
    %v163 = vmul.f32 %v153, %v153
    %v164 = vsub.f32 %v160, %v162
    %v165 = vsub.f32 %v161, %v163
    %v166 = vsub.f32 %v146, %v152
    %v167 = vsub.f32 %v147, %v153
    %v168 = vadd.f32 %v164, 1e-05
    %v169 = vadd.f32 %v165, 1e-05
    %v170 = vrsqrt.pop %v168
    %v171 = vrsqrt.pop %v169
    %v172 = vmul.f32 %v166, %v170
    %v173 = vmul.f32 %v167, %v171
    %v175 = vlaneseq
    %v176 = vshrl.u32 %v175, 7
    %v177 = vsub.s32 0, %v176
    %v178 = vrot.slane %v144, %v177
    %v180 = vmul.f32 %v172, %v178
    %v181 = vmul.f32 %v173, %v178
    %v183 = vlaneseq
    %v184 = vshrl.u32 %v183, 7
    %v185 = vsub.s32 0, %v184
    %v186 = vrot.slane %v145, %v185
    %v188 = vadd.f32 %v180, %v186
    %v189 = vadd.f32 %v181, %v186
    %190 = vst [vmem:[#allocation7] sm:$0xff] %v188
    %191 = vst [vmem:[#allocation7 + $0x8] sm:$0xff] %v189
    // Predicated region
    $region30: #{tpu_custom_call.1} parent=1 // pred_check
      _
    $region31: #{tpu_custom_call.1} parent=1 // pred_check_branch
      %193 = sbr.rel (0) target = $region33
    $region32: #{tpu_custom_call.1} parent=1 // pred_region
      %s195 = ssub.s32 256, 256
      %196 = vsyncadd [#allocation4], %s195
      %s197 = sshll.u32 [#allocation7], 4
      %s198 = int_to_ptr.vmem [resolvable:$true] %s197
      %203 = dma.vmem_to_hbm [thread:$0]  %s198, 256, %s5, [#allocation4], 128, 128, 8
    $region33: #{tpu_custom_call.1} parent=1 // pred_fallthru
      _
    // Predicated region
    $region34: #{tpu_custom_call.1} parent=1 // pred_check
      _
    $region35: #{tpu_custom_call.1} parent=1 // pred_check_branch
      %205 = sbr.rel (0) target = $region37
    $region36: #{tpu_custom_call.1} parent=1 // pred_region
      %206 = dma.done [#allocation4], 256
    $region37: #{tpu_custom_call.1} parent=1 // pred_fallthru
      _
    %207 = vsyncpa [#allocation3], 1
    %208 = vsyncpa [#allocation6], 1
    %209 = vsyncpa [#allocation4], 1

</llo_original>
